<compile_context>
chip_gen: v7x
topology: tpu7x:2x2x1
jax: 0.10.0
libtpu: 0.0.40
codegen_flags: <defaults>
</compile_context>

<pallas_src>
import functools

import jax
import jax.numpy as jnp
from jax import lax
from jax.experimental import pallas as pl
from jax.experimental.pallas import tpu as pltpu


# -------------------------------------------------------------------------
# Shared select-and-evaluate chain (lane-dense chunk).
#   vt            : [m, r]       values, spline rows on the lane axis
#   kn_ref        : [n_bins, r]  knots[:, 1:]  (kn[i-1] == knots[:, i])
#   a_ref, b_ref  : [n_bins, r]  per-bin intercept / coefficient
# Bin semantics match the torch loop for sorted knots: later bins win ties,
# out-of-range values fall back to bin 0.
# -------------------------------------------------------------------------
def _select_eval(vt, kn_ref, a_ref, b_ref, n_bins, out_dtype):
    if n_bins <= 16:
        # Small bin count: fully unrolled one-sided search (pure VPU work).
        a_sel = a_ref[0:1, :]
        b_sel = b_ref[0:1, :]
        for i in range(1, n_bins):
            m = vt >= kn_ref[i - 1:i, :]
            a_sel = jnp.where(m, a_ref[i:i + 1, :], a_sel)
            b_sel = jnp.where(m, b_ref[i:i + 1, :], b_sel)
    else:
        # Large bin count: bound instruction count with a fori_loop (unroll=2
        # restores some co-issue across bins), reading one bin per iteration.
        def body(i, carry):
            a_sel, b_sel = carry
            m = vt >= kn_ref[pl.ds(i - 1, 1), :]
            return (jnp.where(m, a_ref[pl.ds(i, 1), :], a_sel),
                    jnp.where(m, b_ref[pl.ds(i, 1), :], b_sel))

        init = (jnp.broadcast_to(a_ref[0:1, :], vt.shape),
                jnp.broadcast_to(b_ref[0:1, :], vt.shape))
        a_sel, b_sel = lax.fori_loop(1, n_bins, body, init, unroll=2)

    # Above-range values must revert to bin 0 (reference semantics).
    in_hi = vt <= kn_ref[n_bins - 1:n_bins, :]          # knots[:, n_bins]
    a_sel = jnp.where(in_hi, a_sel, a_ref[0:1, :])
    b_sel = jnp.where(in_hi, b_sel, b_ref[0:1, :])
    return (a_sel + b_sel * vt).astype(out_dtype)


# -------------------------------------------------------------------------
# Kernel B (main path): value/out blocks stay in the natural [rows, samples]
# layout; each 128-sample chunk is transposed in-kernel into the lane-dense
# layout (XLU work, a different issue slot than the VALU-bound select chain).
# -------------------------------------------------------------------------
def _spline_natural_kernel(v_ref, kn_ref, a_ref, b_ref, out_ref, *,
                           n_bins, chunk_s):
    tile_s = v_ref.shape[1]
    # Static chunk walk: static lane slices are views, and the per-chunk
    # transposes are canonical [tile_r, 128] <-> [128, tile_r] f32 transposes.
    for c in range(tile_s // chunk_s):
        lo = c * chunk_s
        vt = v_ref[:, lo:lo + chunk_s].T                       # [chunk_s, tile_r]
        res = _select_eval(vt, kn_ref, a_ref, b_ref, n_bins, out_ref.dtype)
        out_ref[:, lo:lo + chunk_s] = res.T


# -------------------------------------------------------------------------
# Kernel A (small / narrow fallback): blocks already lane-dense [samples, rows].
# -------------------------------------------------------------------------
def _spline_lanedense_kernel(vt_ref, kn_ref, a_ref, b_ref, out_ref, *, n_bins):
    out_ref[...] = _select_eval(vt_ref[...], kn_ref, a_ref, b_ref, n_bins,
                                out_ref.dtype)


# -------------------------------------------------------------------------
# Wrapper-side helpers
# -------------------------------------------------------------------------
def _round_down(x, m):
    return (x // m) * m


@functools.lru_cache(maxsize=None)
def _vmem_capacity_bytes():
    try:
        return int(pltpu.get_tpu_info().vmem_capacity_bytes)
    except Exception:                       # conservative (v7x-sized) default
        return 64 * 1024 * 1024


def _vmem_limit(block_bytes, param_bytes):
    # Double-buffered value + out blocks, double-buffered params, plus slack
    # for in-kernel transposed chunks / compiler scratch.
    limit = 4 * block_bytes + 4 * param_bytes + (8 << 20)
    limit = max(limit, 16 << 20)
    return int(min(limit, (_vmem_capacity_bytes() * 3) // 4))


def _cost(R, S, n_bins):
    return pl.CostEstimate(flops=(3 * n_bins + 8) * R * S,
                           transcendentals=0,
                           bytes_accessed=4 * (2 * R * S + 3 * n_bins * R))


def _spline_natural(v2, kn, a_t, b_t):
    """Main path: value stays in its natural [R, S] layout (no XLA transpose)."""
    R, S = v2.shape
    n_bins = kn.shape[0]
    itemsize = v2.dtype.itemsize

    # Lane (sample) axis: 128-multiple tile, never exceeding S.
    tile_s = min(_round_down(S, 128), 1024)
    # Sublane (row) axis: 128-multiple tile sized for ~2 MiB value blocks.
    tile_r = (2 << 20) // (tile_s * itemsize)
    tile_r = max(128, min(_round_down(tile_r, 128), 512))
    tile_r = min(tile_r, _round_down(R, 128))

    # v7x has two TensorCores: ensure >= 2 blocks on a "parallel" axis when the
    # problem is big enough to split (no effect on v5e/v6e).
    if pl.cdiv(R, tile_r) * pl.cdiv(S, tile_s) == 1:
        if R >= 256:
            tile_r = max(128, _round_down(R // 2, 128))
        elif S >= 256:
            tile_s = max(128, _round_down(S // 2, 128))

    grid = (pl.cdiv(R, tile_r), pl.cdiv(S, tile_s))   # sample axis innermost:
    val_spec = pl.BlockSpec((tile_r, tile_s), lambda ri, si: (ri, si))
    par_spec = pl.BlockSpec((n_bins, tile_r), lambda ri, si: (0, ri))  # resident

    return pl.pallas_call(
        functools.partial(_spline_natural_kernel, n_bins=n_bins, chunk_s=128),
        out_shape=jax.ShapeDtypeStruct((R, S), v2.dtype),
        grid=grid,
        in_specs=[val_spec, par_spec, par_spec, par_spec],
        out_specs=val_spec,
        compiler_params=pltpu.CompilerParams(
            dimension_semantics=("parallel", "parallel"),
            vmem_limit_bytes=_vmem_limit(tile_r * tile_s * itemsize,
                                         3 * n_bins * tile_r * itemsize)),
        cost_estimate=_cost(R, S, n_bins),
    )(v2, kn, a_t, b_t)


def _spline_lanedense(v2, kn, a_t, b_t):
    """Fallback for small / narrow problems: cheap wrapper transpose to [S, R]."""
    R, S = v2.shape
    n_bins = kn.shape[0]
    itemsize = v2.dtype.itemsize
    vt = v2.T                                   # small here, negligible traffic

    tile_r = R if R <= 2048 else 1024           # lanes (rows)
    tile_s = S if S <= 1024 else 512            # sublanes (samples)
    grid = (pl.cdiv(R, tile_r), pl.cdiv(S, tile_s))
    val_spec = pl.BlockSpec((tile_s, tile_r), lambda ri, si: (si, ri))
    par_spec = pl.BlockSpec((n_bins, tile_r), lambda ri, si: (0, ri))

    out_t = pl.pallas_call(
        functools.partial(_spline_lanedense_kernel, n_bins=n_bins),
        out_shape=jax.ShapeDtypeStruct((S, R), v2.dtype),
        grid=grid,
        in_specs=[val_spec, par_spec, par_spec, par_spec],
        out_specs=val_spec,
        compiler_params=pltpu.CompilerParams(
            dimension_semantics=("parallel", "parallel"),
            vmem_limit_bytes=_vmem_limit(tile_r * tile_s * itemsize,
                                         3 * n_bins * tile_r * itemsize)),
        cost_estimate=_cost(R, S, n_bins),
    )(vt, kn, a_t, b_t)
    return out_t.T


@functools.partial(jax.jit, static_argnames=("inverse",))
def _spline_forward(value, knots, x_low, y_low, slope, *, inverse):
    """value: [B, D, S]; knots: [B, D, n_bins+1]; params: [B, D, n_bins]."""
    B, D, S = value.shape
    R = B * D
    n_bins = slope.shape[-1]

    # Fold each bin's parameters into (intercept a, coefficient b):
    #   forward : y_low + slope * (v - x_low) = a + b*v,  b = slope
    #   inverse : x_low + (v - y_low) / slope = a + b*v,  b = 1/slope
    if inverse:
        b = 1.0 / slope
        a = x_low - y_low * b
    else:
        b = slope
        a = y_low - slope * x_low

    v2 = value.reshape(R, S)                       # free reshape, no transpose
    # Per-row parameters to lane-dense [n_bins, R]; these arrays are tiny
    # (n_bins * R), so transposing them on the XLA side is negligible.
    kn = knots.reshape(R, n_bins + 1)[:, 1:].T     # kn[i-1] == knots[:, i]
    a_t = a.reshape(R, n_bins).T
    b_t = b.reshape(R, n_bins).T

    if R >= 128 and S >= 128:
        out2 = _spline_natural(v2, kn, a_t, b_t)
    else:
        out2 = _spline_lanedense(v2, kn, a_t, b_t)
    return out2.reshape(B, D, S)


# -------------------------------------------------------------------------
# SplineFunction wrapper (JAX glue mirroring the PyTorch module's forward)
# -------------------------------------------------------------------------
class SplineFunction:
    """Piecewise-linear spline applied elementwise with per-(batch, dim) bins.

    Bin search, per-bin parameter gather and spline evaluation are fused into
    a single Pallas TPU kernel.  Assumes sorted knots (as produced by monotone
    splines), which is what makes the one-sided bin search equivalent to the
    reference's two-sided loop.
    """
    # TODO(synk): the torch module accepts an arbitrary `spline_fn` callback;
    # only the piecewise-linear spline (and its inverse) is fused here.

    def __init__(self, x, y, spline_params, has_inverse=True):
        self.x = x                              # [B, D, n_bins+1]
        self.y = y                              # [B, D, n_bins+1]
        self.spline_params = spline_params      # (x_low, y_low, slope)
        self.has_inverse = has_inverse

    def __call__(self, value, inverse=False):
        if inverse and (not self.has_inverse):
            raise ValueError("Attempting to invert density without inverse.")
        squeeze = value.ndim == 2
        if squeeze:
            value = value[..., None]
        x_low, y_low, slope = self.spline_params
        knots = self.y if inverse else self.x
        out = _spline_forward(value, knots, x_low, y_low, slope, inverse=inverse)
        if squeeze:
            out = out[..., 0]
        return out


# -------------------------------------------------------------------------
# Pure-JAX reference (mirrors the PyTorch semantics exactly) for validation
# -------------------------------------------------------------------------
def _reference_forward(value, x, y, spline_params, inverse=False):
    knots = y if inverse else x
    n_bins = knots.shape[-1] - 1
    bins = jnp.zeros(value.shape, dtype=jnp.int32)
    for i in range(n_bins):
        mask = (knots[..., i:i + 1] <= value) & (value <= knots[..., i + 1:i + 2])
        bins = jnp.where(mask, i, bins)
    gather = lambda p: jnp.take_along_axis(p, bins, axis=-1)
    x_low, y_low, slope = (gather(p) for p in spline_params)
    if inverse:
        return x_low + (value - y_low) / slope
    return y_low + slope * (value - x_low)


def _make_spline(key, B, D, n_bins):
    kx, ky = jax.random.split(key)
    x_w = 0.1 + jax.nn.softplus(jax.random.normal(kx, (B, D, n_bins), jnp.float32))
    x = jnp.concatenate([jnp.full((B, D, 1), -1.0, jnp.float32),
                         -1.0 + jnp.cumsum(x_w, axis=-1)], axis=-1)
    y_h = 0.1 + jax.nn.softplus(jax.random.normal(ky, (B, D, n_bins), jnp.float32))
    y = jnp.concatenate([jnp.full((B, D, 1), -1.0, jnp.float32),
                         -1.0 + jnp.cumsum(y_h, axis=-1)], axis=-1)
    x_low, y_low = x[..., :-1], y[..., :-1]
    slope = (y[..., 1:] - y[..., :-1]) / (x[..., 1:] - x[..., :-1])
    return x, y, (x_low, y_low, slope)


def _check(B, D, S, n_bins, key, check_2d=False):
    kp, kv = jax.random.split(key)
    x, y, params = _make_spline(kp, B, D, n_bins)
    module = SplineFunction(x, y, params, has_inverse=True)
    value = jax.random.uniform(kv, (B, D, S), jnp.float32,
                               minval=-1.5, maxval=float(jnp.max(x)) + 0.5)

    out_f = module(value, inverse=False)
    jax.block_until_ready(out_f)
    ref_f = _reference_forward(value, x, y, params, inverse=False)
    assert out_f.shape == value.shape and out_f.dtype == value.dtype
    assert jnp.allclose(out_f, ref_f, atol=2e-4, rtol=1e-4)

    out_i = module(value, inverse=True)
    jax.block_until_ready(out_i)
    ref_i = _reference_forward(value, x, y, params, inverse=True)
    assert jnp.allclose(out_i, ref_i, atol=2e-4, rtol=1e-4)

    if check_2d:  # exercise the [batch, n_dims] input path
        out2d = module(value[..., 0], inverse=False)
        jax.block_until_ready(out2d)
        assert jnp.allclose(out2d, ref_f[..., 0], atol=2e-4, rtol=1e-4)


if __name__ == "__main__":
    key = jax.random.PRNGKey(0)
    k_small, k_mid = jax.random.split(key)

    # Small case (typical [batch, n_dims, n_samples] usage) -> fallback path.
    _check(B=2, D=4, S=16, n_bins=8, key=k_small, check_2d=True)

    # Moderate case: exercises the natural-layout main path, multi-chunk
    # in-kernel transposes and a partial (non-divisible) row block
    # (R = B*D = 300, S = 640).
    _check(B=4, D=75, S=640, n_bins=8, key=k_mid)

    print("KERNEL_OK")
</pallas_src>

<mosaic_0001>
module attributes {stable_mosaic.version = 11 : i64} {
  func.func @_spline_lanedense_kernel(%arg0: i32, %arg1: i32, %arg2: memref<16x8xf32, #tpu.memory_space<vmem>>, %arg3: memref<8x8xf32, #tpu.memory_space<vmem>>, %arg4: memref<8x8xf32, #tpu.memory_space<vmem>>, %arg5: memref<8x8xf32, #tpu.memory_space<vmem>>, %arg6: memref<16x8xf32, #tpu.memory_space<vmem>>) attributes {dimension_semantics = [#tpu.dimension_semantics<parallel>, #tpu.dimension_semantics<parallel>], iteration_bounds = array<i64: 1, 1>, scalar_prefetch = 0 : i64, scratch_operands = 0 : i64, tpu.core_type = #tpu.core_type<tc>, window_params = [{transform_indices = @transform_0, window_bounds = array<i64: 16, 8>}, {transform_indices = @transform_1, window_bounds = array<i64: 8, 8>}, {transform_indices = @transform_2, window_bounds = array<i64: 8, 8>}, {transform_indices = @transform_3, window_bounds = array<i64: 8, 8>}, {transform_indices = @transform_4, window_bounds = array<i64: 16, 8>}]} {
    %c0 = arith.constant 0 : index
    %c0_0 = arith.constant 0 : index
    %0 = vector.load %arg2[%c0, %c0_0] : memref<16x8xf32, #tpu.memory_space<vmem>>, vector<16x8xf32>
    %c0_1 = arith.constant 0 : index
    %c0_2 = arith.constant 0 : index
    %1 = vector.load %arg4[%c0_1, %c0_2] : memref<8x8xf32, #tpu.memory_space<vmem>>, vector<1x8xf32>
    %c0_3 = arith.constant 0 : index
    %c0_4 = arith.constant 0 : index
    %2 = vector.load %arg5[%c0_3, %c0_4] : memref<8x8xf32, #tpu.memory_space<vmem>>, vector<1x8xf32>
    %c0_5 = arith.constant 0 : index
    %c0_6 = arith.constant 0 : index
    %3 = vector.load %arg3[%c0_5, %c0_6] : memref<8x8xf32, #tpu.memory_space<vmem>>, vector<1x8xf32>
    %4 = vector.broadcast %3 : vector<1x8xf32> to vector<16x8xf32>
    %5 = arith.cmpf oge, %0, %4 : vector<16x8xf32>
    %c1 = arith.constant 1 : index
    %c0_7 = arith.constant 0 : index
    %6 = vector.load %arg4[%c1, %c0_7] : memref<8x8xf32, #tpu.memory_space<vmem>>, vector<1x8xf32>
    %7 = vector.shape_cast %6 : vector<1x8xf32> to vector<1x8xf32>
    %8 = vector.broadcast %7 : vector<1x8xf32> to vector<16x8xf32>
    %9 = vector.shape_cast %1 : vector<1x8xf32> to vector<1x8xf32>
    %10 = vector.broadcast %9 : vector<1x8xf32> to vector<16x8xf32>
    %11 = arith.select %5, %8, %10 : vector<16x8xi1>, vector<16x8xf32>
    %c1_8 = arith.constant 1 : index
    %c0_9 = arith.constant 0 : index
    %12 = vector.load %arg5[%c1_8, %c0_9] : memref<8x8xf32, #tpu.memory_space<vmem>>, vector<1x8xf32>
    %13 = vector.shape_cast %12 : vector<1x8xf32> to vector<1x8xf32>
    %14 = vector.broadcast %13 : vector<1x8xf32> to vector<16x8xf32>
    %15 = vector.shape_cast %2 : vector<1x8xf32> to vector<1x8xf32>
    %16 = vector.broadcast %15 : vector<1x8xf32> to vector<16x8xf32>
    %17 = arith.select %5, %14, %16 : vector<16x8xi1>, vector<16x8xf32>
    %c1_10 = arith.constant 1 : index
    %c0_11 = arith.constant 0 : index
    %18 = vector.load %arg3[%c1_10, %c0_11] : memref<8x8xf32, #tpu.memory_space<vmem>>, vector<1x8xf32>
    %19 = vector.broadcast %18 : vector<1x8xf32> to vector<16x8xf32>
    %20 = arith.cmpf oge, %0, %19 : vector<16x8xf32>
    %c2 = arith.constant 2 : index
    %c0_12 = arith.constant 0 : index
    %21 = vector.load %arg4[%c2, %c0_12] : memref<8x8xf32, #tpu.memory_space<vmem>>, vector<1x8xf32>
    %22 = vector.shape_cast %21 : vector<1x8xf32> to vector<1x8xf32>
    %23 = vector.broadcast %22 : vector<1x8xf32> to vector<16x8xf32>
    %24 = arith.select %20, %23, %11 : vector<16x8xi1>, vector<16x8xf32>
    %c2_13 = arith.constant 2 : index
    %c0_14 = arith.constant 0 : index
    %25 = vector.load %arg5[%c2_13, %c0_14] : memref<8x8xf32, #tpu.memory_space<vmem>>, vector<1x8xf32>
    %26 = vector.shape_cast %25 : vector<1x8xf32> to vector<1x8xf32>
    %27 = vector.broadcast %26 : vector<1x8xf32> to vector<16x8xf32>
    %28 = arith.select %20, %27, %17 : vector<16x8xi1>, vector<16x8xf32>
    %c2_15 = arith.constant 2 : index
    %c0_16 = arith.constant 0 : index
    %29 = vector.load %arg3[%c2_15, %c0_16] : memref<8x8xf32, #tpu.memory_space<vmem>>, vector<1x8xf32>
    %30 = vector.broadcast %29 : vector<1x8xf32> to vector<16x8xf32>
    %31 = arith.cmpf oge, %0, %30 : vector<16x8xf32>
    %c3 = arith.constant 3 : index
    %c0_17 = arith.constant 0 : index
    %32 = vector.load %arg4[%c3, %c0_17] : memref<8x8xf32, #tpu.memory_space<vmem>>, vector<1x8xf32>
    %33 = vector.shape_cast %32 : vector<1x8xf32> to vector<1x8xf32>
    %34 = vector.broadcast %33 : vector<1x8xf32> to vector<16x8xf32>
    %35 = arith.select %31, %34, %24 : vector<16x8xi1>, vector<16x8xf32>
    %c3_18 = arith.constant 3 : index
    %c0_19 = arith.constant 0 : index
    %36 = vector.load %arg5[%c3_18, %c0_19] : memref<8x8xf32, #tpu.memory_space<vmem>>, vector<1x8xf32>
    %37 = vector.shape_cast %36 : vector<1x8xf32> to vector<1x8xf32>
    %38 = vector.broadcast %37 : vector<1x8xf32> to vector<16x8xf32>
    %39 = arith.select %31, %38, %28 : vector<16x8xi1>, vector<16x8xf32>
    %c3_20 = arith.constant 3 : index
    %c0_21 = arith.constant 0 : index
    %40 = vector.load %arg3[%c3_20, %c0_21] : memref<8x8xf32, #tpu.memory_space<vmem>>, vector<1x8xf32>
    %41 = vector.broadcast %40 : vector<1x8xf32> to vector<16x8xf32>
    %42 = arith.cmpf oge, %0, %41 : vector<16x8xf32>
    %c4 = arith.constant 4 : index
    %c0_22 = arith.constant 0 : index
    %43 = vector.load %arg4[%c4, %c0_22] : memref<8x8xf32, #tpu.memory_space<vmem>>, vector<1x8xf32>
    %44 = vector.shape_cast %43 : vector<1x8xf32> to vector<1x8xf32>
    %45 = vector.broadcast %44 : vector<1x8xf32> to vector<16x8xf32>
    %46 = arith.select %42, %45, %35 : vector<16x8xi1>, vector<16x8xf32>
    %c4_23 = arith.constant 4 : index
    %c0_24 = arith.constant 0 : index
    %47 = vector.load %arg5[%c4_23, %c0_24] : memref<8x8xf32, #tpu.memory_space<vmem>>, vector<1x8xf32>
    %48 = vector.shape_cast %47 : vector<1x8xf32> to vector<1x8xf32>
    %49 = vector.broadcast %48 : vector<1x8xf32> to vector<16x8xf32>
    %50 = arith.select %42, %49, %39 : vector<16x8xi1>, vector<16x8xf32>
    %c4_25 = arith.constant 4 : index
    %c0_26 = arith.constant 0 : index
    %51 = vector.load %arg3[%c4_25, %c0_26] : memref<8x8xf32, #tpu.memory_space<vmem>>, vector<1x8xf32>
    %52 = vector.broadcast %51 : vector<1x8xf32> to vector<16x8xf32>
    %53 = arith.cmpf oge, %0, %52 : vector<16x8xf32>
    %c5 = arith.constant 5 : index
    %c0_27 = arith.constant 0 : index
    %54 = vector.load %arg4[%c5, %c0_27] : memref<8x8xf32, #tpu.memory_space<vmem>>, vector<1x8xf32>
    %55 = vector.shape_cast %54 : vector<1x8xf32> to vector<1x8xf32>
    %56 = vector.broadcast %55 : vector<1x8xf32> to vector<16x8xf32>
    %57 = arith.select %53, %56, %46 : vector<16x8xi1>, vector<16x8xf32>
    %c5_28 = arith.constant 5 : index
    %c0_29 = arith.constant 0 : index
    %58 = vector.load %arg5[%c5_28, %c0_29] : memref<8x8xf32, #tpu.memory_space<vmem>>, vector<1x8xf32>
    %59 = vector.shape_cast %58 : vector<1x8xf32> to vector<1x8xf32>
    %60 = vector.broadcast %59 : vector<1x8xf32> to vector<16x8xf32>
    %61 = arith.select %53, %60, %50 : vector<16x8xi1>, vector<16x8xf32>
    %c5_30 = arith.constant 5 : index
    %c0_31 = arith.constant 0 : index
    %62 = vector.load %arg3[%c5_30, %c0_31] : memref<8x8xf32, #tpu.memory_space<vmem>>, vector<1x8xf32>
    %63 = vector.broadcast %62 : vector<1x8xf32> to vector<16x8xf32>
    %64 = arith.cmpf oge, %0, %63 : vector<16x8xf32>
    %c6 = arith.constant 6 : index
    %c0_32 = arith.constant 0 : index
    %65 = vector.load %arg4[%c6, %c0_32] : memref<8x8xf32, #tpu.memory_space<vmem>>, vector<1x8xf32>
    %66 = vector.shape_cast %65 : vector<1x8xf32> to vector<1x8xf32>
    %67 = vector.broadcast %66 : vector<1x8xf32> to vector<16x8xf32>
    %68 = arith.select %64, %67, %57 : vector<16x8xi1>, vector<16x8xf32>
    %c6_33 = arith.constant 6 : index
    %c0_34 = arith.constant 0 : index
    %69 = vector.load %arg5[%c6_33, %c0_34] : memref<8x8xf32, #tpu.memory_space<vmem>>, vector<1x8xf32>
    %70 = vector.shape_cast %69 : vector<1x8xf32> to vector<1x8xf32>
    %71 = vector.broadcast %70 : vector<1x8xf32> to vector<16x8xf32>
    %72 = arith.select %64, %71, %61 : vector<16x8xi1>, vector<16x8xf32>
    %c6_35 = arith.constant 6 : index
    %c0_36 = arith.constant 0 : index
    %73 = vector.load %arg3[%c6_35, %c0_36] : memref<8x8xf32, #tpu.memory_space<vmem>>, vector<1x8xf32>
    %74 = vector.broadcast %73 : vector<1x8xf32> to vector<16x8xf32>
    %75 = arith.cmpf oge, %0, %74 : vector<16x8xf32>
    %c7 = arith.constant 7 : index
    %c0_37 = arith.constant 0 : index
    %76 = vector.load %arg4[%c7, %c0_37] : memref<8x8xf32, #tpu.memory_space<vmem>>, vector<1x8xf32>
    %77 = vector.shape_cast %76 : vector<1x8xf32> to vector<1x8xf32>
    %78 = vector.broadcast %77 : vector<1x8xf32> to vector<16x8xf32>
    %79 = arith.select %75, %78, %68 : vector<16x8xi1>, vector<16x8xf32>
    %c7_38 = arith.constant 7 : index
    %c0_39 = arith.constant 0 : index
    %80 = vector.load %arg5[%c7_38, %c0_39] : memref<8x8xf32, #tpu.memory_space<vmem>>, vector<1x8xf32>
    %81 = vector.shape_cast %80 : vector<1x8xf32> to vector<1x8xf32>
    %82 = vector.broadcast %81 : vector<1x8xf32> to vector<16x8xf32>
    %83 = arith.select %75, %82, %72 : vector<16x8xi1>, vector<16x8xf32>
    %c7_40 = arith.constant 7 : index
    %c0_41 = arith.constant 0 : index
    %84 = vector.load %arg3[%c7_40, %c0_41] : memref<8x8xf32, #tpu.memory_space<vmem>>, vector<1x8xf32>
    %85 = vector.broadcast %84 : vector<1x8xf32> to vector<16x8xf32>
    %86 = arith.cmpf ole, %0, %85 : vector<16x8xf32>
    %c0_42 = arith.constant 0 : index
    %c0_43 = arith.constant 0 : index
    %87 = vector.load %arg4[%c0_42, %c0_43] : memref<8x8xf32, #tpu.memory_space<vmem>>, vector<1x8xf32>
    %88 = vector.shape_cast %87 : vector<1x8xf32> to vector<1x8xf32>
    %89 = vector.broadcast %88 : vector<1x8xf32> to vector<16x8xf32>
    %90 = arith.select %86, %79, %89 : vector<16x8xi1>, vector<16x8xf32>
    %c0_44 = arith.constant 0 : index
    %c0_45 = arith.constant 0 : index
    %91 = vector.load %arg5[%c0_44, %c0_45] : memref<8x8xf32, #tpu.memory_space<vmem>>, vector<1x8xf32>
    %92 = vector.shape_cast %91 : vector<1x8xf32> to vector<1x8xf32>
    %93 = vector.broadcast %92 : vector<1x8xf32> to vector<16x8xf32>
    %94 = arith.select %86, %83, %93 : vector<16x8xi1>, vector<16x8xf32>
    %95 = arith.mulf %94, %0 : vector<16x8xf32>
    %96 = arith.addf %90, %95 : vector<16x8xf32>
    %c0_46 = arith.constant 0 : index
    %c0_47 = arith.constant 0 : index
    %97 = vector.load %arg6[%c0_46, %c0_47] : memref<16x8xf32, #tpu.memory_space<vmem>>, vector<16x8xf32>
    tpu.vector_store %arg6[%c0_46, %c0_47], %96 {strides = array<i32>} : memref<16x8xf32, #tpu.memory_space<vmem>>, vector<16x8xf32>,
    return
  }
  func.func @transform_0(%arg0: i32, %arg1: i32) -> (i32, i32) {
    %c0_i32 = arith.constant 0 : i32
    return %arg1, %arg0 : i32, i32
  }
  func.func @transform_1(%arg0: i32, %arg1: i32) -> (i32, i32) {
    %c0_i32 = arith.constant 0 : i32
    %c0_i32_0 = arith.constant 0 : i32
    return %c0_i32, %arg0 : i32, i32
  }
  func.func @transform_2(%arg0: i32, %arg1: i32) -> (i32, i32) {
    %c0_i32 = arith.constant 0 : i32
    %c0_i32_0 = arith.constant 0 : i32
    return %c0_i32, %arg0 : i32, i32
  }
  func.func @transform_3(%arg0: i32, %arg1: i32) -> (i32, i32) {
    %c0_i32 = arith.constant 0 : i32
    %c0_i32_0 = arith.constant 0 : i32
    return %c0_i32, %arg0 : i32, i32
  }
  func.func @transform_4(%arg0: i32, %arg1: i32) -> (i32, i32) {
    %c0_i32 = arith.constant 0 : i32
    return %arg1, %arg0 : i32, i32
  }
}

</mosaic_0001>

<llo_original>
// kernel: _spline_forward.1
$region0: #{_spline_forward.1}
  #allocation0 [shape = 'u32[]', space=smem, size = 0x4, offset = 0x4, fixed_abs, tag = 'smem constant byte address 0x4 - core index']
  #allocation1 [shape = 'u32[144,128]{1,0:T(1,128)}', space=vmem, size = 0x12000, scoped, tag = 'internal scratch']
  %s0 = inlined_call_operand.vmem [shape: f32[16,8], index: 0, kind: input, shape index: {}]
  %s1 = inlined_call_operand.vmem [shape: f32[8,8], index: 1, kind: input, shape index: {}]
  %s2 = inlined_call_operand.vmem [shape: f32[8,8], index: 2, kind: input, shape index: {}]
  %s3 = inlined_call_operand.vmem [shape: f32[8,8], index: 3, kind: input, shape index: {}]
  %s4 = inlined_call_operand.vmem [shape: f32[16,8], index: 4, kind: output, shape index: {}]
  %s5 = sld [smem:[#allocation0]]
  $region26: #{_spline_forward.1} parent=0
    _
  %s7 = ssub.s32 1, %s5
  %s8 = scalar_select 0, %s7, %s5
  // Predicated region
  $region2: #{_spline_forward.1} parent=0 // pred_check
    _
  $region3: #{_spline_forward.1} parent=0 // pred_check_branch
    %10 = sbr.rel (0) target = $region5
  $region4: #{_spline_forward.1} parent=0 // pred_region
    _
  $region5: #{_spline_forward.1} parent=0 // pred_fallthru
    _
  // Predicated region
  $region6: #{_spline_forward.1} parent=0 // pred_check
    _
  $region7: #{_spline_forward.1} parent=0 // pred_check_branch
    %12 = sbr.rel (0) target = $region9
  $region8: #{_spline_forward.1} parent=0 // pred_region
    _
  $region9: #{_spline_forward.1} parent=0 // pred_fallthru
    _
  // Predicated region
  $region10: #{_spline_forward.1} parent=0 // pred_check
    _
  $region11: #{_spline_forward.1} parent=0 // pred_check_branch
    %14 = sbr.rel (0) target = $region13
  $region12: #{_spline_forward.1} parent=0 // pred_region
    _
  $region13: #{_spline_forward.1} parent=0 // pred_fallthru
    _
  // Predicated region
  $region14: #{_spline_forward.1} parent=0 // pred_check
    _
  $region15: #{_spline_forward.1} parent=0 // pred_check_branch
    %16 = sbr.rel (0) target = $region17
  $region16: #{_spline_forward.1} parent=0 // pred_region
    _
  $region17: #{_spline_forward.1} parent=0 // pred_fallthru
    _
  %v17 = vld [vmem:[%s0] sm:$0xff]
  %v18 = vld [vmem:[%s0 + $0x8] sm:$0xff]
  %v19 = vld [vmem:[%s2] sm:$0x1]
  %v20 = vld [vmem:[%s3] sm:$0x1]
  %v21 = vld [vmem:[%s1] sm:$0x1]
  %v22 = vlaneseq
  %v23 = vshrl.u32 %v22, 7
  %v24 = vsub.s32 0, %v23
  %v25 = vrot.slane %v21, %v24
  %vm26 = vcmp.ge.f32.partialorder %v17, %v25
  %vm27 = vcmp.ge.f32.partialorder %v18, %v25
  %v28 = vld [vmem:[%s2 + $0x1] sm:$0x1]
  %v29 = vlaneseq
  %v30 = vshrl.u32 %v29, 7
  %v31 = vsub.s32 0, %v30
  %v32 = vrot.slane %v28, %v31
  %v33 = vlaneseq
  %v34 = vshrl.u32 %v33, 7
  %v35 = vsub.s32 0, %v34
  %v36 = vrot.slane %v19, %v35
  %v37 = vsel %vm26, %v32, %v36
  %v38 = vsel %vm27, %v32, %v36
  %v39 = vld [vmem:[%s3 + $0x1] sm:$0x1]
  %v40 = vlaneseq
  %v41 = vshrl.u32 %v40, 7
  %v42 = vsub.s32 0, %v41
  %v43 = vrot.slane %v39, %v42
  %v44 = vlaneseq
  %v45 = vshrl.u32 %v44, 7
  %v46 = vsub.s32 0, %v45
  %v47 = vrot.slane %v20, %v46
  %v48 = vsel %vm26, %v43, %v47
  %v49 = vsel %vm27, %v43, %v47
  %v50 = vld [vmem:[%s1 + $0x1] sm:$0x1]
  %v51 = vlaneseq
  %v52 = vshrl.u32 %v51, 7
  %v53 = vsub.s32 0, %v52
  %v54 = vrot.slane %v50, %v53
  %vm55 = vcmp.ge.f32.partialorder %v17, %v54
  %vm56 = vcmp.ge.f32.partialorder %v18, %v54
  %v57 = vld [vmem:[%s2 + $0x2] sm:$0x1]
  %v58 = vlaneseq
  %v59 = vshrl.u32 %v58, 7
  %v60 = vsub.s32 0, %v59
  %v61 = vrot.slane %v57, %v60
  %v62 = vsel %vm55, %v61, %v37
  %v63 = vsel %vm56, %v61, %v38
  %v64 = vld [vmem:[%s3 + $0x2] sm:$0x1]
  %v65 = vlaneseq
  %v66 = vshrl.u32 %v65, 7
  %v67 = vsub.s32 0, %v66
  %v68 = vrot.slane %v64, %v67
  %v69 = vsel %vm55, %v68, %v48
  %v70 = vsel %vm56, %v68, %v49
  %v71 = vld [vmem:[%s1 + $0x2] sm:$0x1]
  %v72 = vlaneseq
  %v73 = vshrl.u32 %v72, 7
  %v74 = vsub.s32 0, %v73
  %v75 = vrot.slane %v71, %v74
  %vm76 = vcmp.ge.f32.partialorder %v17, %v75
  %vm77 = vcmp.ge.f32.partialorder %v18, %v75
  %v78 = vld [vmem:[%s2 + $0x3] sm:$0x1]
  %v79 = vlaneseq
  %v80 = vshrl.u32 %v79, 7
  %v81 = vsub.s32 0, %v80
  %v82 = vrot.slane %v78, %v81
  %v83 = vsel %vm76, %v82, %v62
  %v84 = vsel %vm77, %v82, %v63
  %v85 = vld [vmem:[%s3 + $0x3] sm:$0x1]
  %v86 = vlaneseq
  %v87 = vshrl.u32 %v86, 7
  %v88 = vsub.s32 0, %v87
  %v89 = vrot.slane %v85, %v88
  %v90 = vsel %vm76, %v89, %v69
  %v91 = vsel %vm77, %v89, %v70
  %v92 = vld [vmem:[%s1 + $0x3] sm:$0x1]
  %v93 = vlaneseq
  %v94 = vshrl.u32 %v93, 7
  %v95 = vsub.s32 0, %v94
  %v96 = vrot.slane %v92, %v95
  %vm97 = vcmp.ge.f32.partialorder %v17, %v96
  %vm98 = vcmp.ge.f32.partialorder %v18, %v96
  %v99 = vld [vmem:[%s2 + $0x4] sm:$0x1]
  %v100 = vlaneseq
  %v101 = vshrl.u32 %v100, 7
  %v102 = vsub.s32 0, %v101
  %v103 = vrot.slane %v99, %v102
  %v104 = vsel %vm97, %v103, %v83
  %v105 = vsel %vm98, %v103, %v84
  %v106 = vld [vmem:[%s3 + $0x4] sm:$0x1]
  %v107 = vlaneseq
  %v108 = vshrl.u32 %v107, 7
  %v109 = vsub.s32 0, %v108
  %v110 = vrot.slane %v106, %v109
  %v111 = vsel %vm97, %v110, %v90
  %v112 = vsel %vm98, %v110, %v91
  %v113 = vld [vmem:[%s1 + $0x4] sm:$0x1]
  %v114 = vlaneseq
  %v115 = vshrl.u32 %v114, 7
  %v116 = vsub.s32 0, %v115
  %v117 = vrot.slane %v113, %v116
  %vm118 = vcmp.ge.f32.partialorder %v17, %v117
  %vm119 = vcmp.ge.f32.partialorder %v18, %v117
  %v120 = vld [vmem:[%s2 + $0x5] sm:$0x1]
  %v121 = vlaneseq
  %v122 = vshrl.u32 %v121, 7
  %v123 = vsub.s32 0, %v122
  %v124 = vrot.slane %v120, %v123
  %v125 = vsel %vm118, %v124, %v104
  %v126 = vsel %vm119, %v124, %v105
  %v127 = vld [vmem:[%s3 + $0x5] sm:$0x1]
  %v128 = vlaneseq
  %v129 = vshrl.u32 %v128, 7
  %v130 = vsub.s32 0, %v129
  %v131 = vrot.slane %v127, %v130
  %v132 = vsel %vm118, %v131, %v111
  %v133 = vsel %vm119, %v131, %v112
  %v134 = vld [vmem:[%s1 + $0x5] sm:$0x1]
  %v135 = vlaneseq
  %v136 = vshrl.u32 %v135, 7
  %v137 = vsub.s32 0, %v136
  %v138 = vrot.slane %v134, %v137
  %vm139 = vcmp.ge.f32.partialorder %v17, %v138
  %vm140 = vcmp.ge.f32.partialorder %v18, %v138
  %v141 = vld [vmem:[%s2 + $0x6] sm:$0x1]
  %v142 = vlaneseq
  %v143 = vshrl.u32 %v142, 7
  %v144 = vsub.s32 0, %v143
  %v145 = vrot.slane %v141, %v144
  %v146 = vsel %vm139, %v145, %v125
  %v147 = vsel %vm140, %v145, %v126
  %v148 = vld [vmem:[%s3 + $0x6] sm:$0x1]
  %v149 = vlaneseq
  %v150 = vshrl.u32 %v149, 7
  %v151 = vsub.s32 0, %v150
  %v152 = vrot.slane %v148, %v151
  %v153 = vsel %vm139, %v152, %v132
  %v154 = vsel %vm140, %v152, %v133
  %v155 = vld [vmem:[%s1 + $0x6] sm:$0x1]
  %v156 = vlaneseq
  %v157 = vshrl.u32 %v156, 7
  %v158 = vsub.s32 0, %v157
  %v159 = vrot.slane %v155, %v158
  %vm160 = vcmp.ge.f32.partialorder %v17, %v159
  %vm161 = vcmp.ge.f32.partialorder %v18, %v159
  %v162 = vld [vmem:[%s2 + $0x7] sm:$0x1]
  %v163 = vlaneseq
  %v164 = vshrl.u32 %v163, 7
  %v165 = vsub.s32 0, %v164
  %v166 = vrot.slane %v162, %v165
  %v167 = vsel %vm160, %v166, %v146
  %v168 = vsel %vm161, %v166, %v147
  %v169 = vld [vmem:[%s3 + $0x7] sm:$0x1]
  %v170 = vlaneseq
  %v171 = vshrl.u32 %v170, 7
  %v172 = vsub.s32 0, %v171
  %v173 = vrot.slane %v169, %v172
  %v174 = vsel %vm160, %v173, %v153
  %v175 = vsel %vm161, %v173, %v154
  %v176 = vld [vmem:[%s1 + $0x7] sm:$0x1]
  %v177 = vlaneseq
  %v178 = vshrl.u32 %v177, 7
  %v179 = vsub.s32 0, %v178
  %v180 = vrot.slane %v176, %v179
  %vm181 = vcmp.le.f32.partialorder %v17, %v180
  %vm182 = vcmp.le.f32.partialorder %v18, %v180
  %v183 = vsel %vm181, %v167, %v36
  %v184 = vsel %vm182, %v168, %v36
  %v185 = vsel %vm181, %v174, %v47
  %v186 = vsel %vm182, %v175, %v47
  %v187 = vmul.f32 %v185, %v17
  %v188 = vmul.f32 %v186, %v18
  %v189 = vadd.f32 %v183, %v187
  %v190 = vadd.f32 %v184, %v188
  %vm191 = vcmask 64512
  %192 = vst.msk [vmem:[%s4] sm:$0xff] %vm191, %v189
  %193 = vst.msk [vmem:[%s4 + $0x8] sm:$0xff] %vm191, %v190
  // Predicated region
  $region18: #{_spline_forward.1} parent=0 // pred_check
    _
  $region19: #{_spline_forward.1} parent=0 // pred_check_branch
    %195 = sbr.rel (0) target = $region21
  $region20: #{_spline_forward.1} parent=0 // pred_region
    _
  $region21: #{_spline_forward.1} parent=0 // pred_fallthru
    _
  // Predicated region
  $region22: #{_spline_forward.1} parent=0 // pred_check
    _
  $region23: #{_spline_forward.1} parent=0 // pred_check_branch
    %197 = sbr.rel (0) target = $region25
  $region24: #{_spline_forward.1} parent=0 // pred_region
    _
  $region25: #{_spline_forward.1} parent=0 // pred_fallthru
    _

</llo_original>
